<compile_context>
chip_gen: v7x
topology: tpu7x:2x2x1
jax: 0.10.0
libtpu: 0.0.40
codegen_flags: <defaults>
</compile_context>

<pallas_src>
import jax
import jax.numpy as jnp
from jax.experimental import pallas as pl
from jax.experimental.pallas import tpu as pltpu


def _pool_kernel(x_ref, o_ref):
    # x_ref: (TM, HW) tile in VMEM; o_ref: (TM, 1).
    x = x_ref[...]
    hw = x.shape[-1]  # static Python int
    # Sum accumulated in f32; max in native dtype; scales folded into constants.
    s = jnp.sum(x, axis=-1, keepdims=True, dtype=jnp.float32)
    m = jnp.max(x, axis=-1, keepdims=True).astype(jnp.float32)
    o_ref[...] = (s * (0.5 / hw) + m * 0.5).astype(o_ref.dtype)


def _choose_row_tile(nc, hw, itemsize,
                     max_rows=1024,
                     per_buffer_bytes=12 * 1024 * 1024):
    """Rows per grid step: largest multiple of 8 whose double-buffered input
    tile stays within a conservative VMEM budget on v5e/v6e/v7x."""
    hw_lanes = ((hw + 127) // 128) * 128            # lane padding in VMEM
    row_bytes = hw_lanes * itemsize
    tm = min(max_rows, max(8, per_buffer_bytes // row_bytes))
    tm = max(8, (int(tm) // 8) * 8)
    nc_padded = ((nc + 7) // 8) * 8                 # don't exceed (padded) NC
    return int(min(tm, nc_padded))


def pooling_forward(x):
    """Pallas equivalent of the PyTorch `Pooling` module.

    x: (N, C, H, W)  -> returns (N, C, 1, 1), same dtype as x.
    """
    N, C, H, W = x.shape
    NC, HW = N * C, H * W
    x2d = x.reshape(NC, HW)                         # free view of NCHW

    TM = _choose_row_tile(NC, HW, jnp.dtype(x.dtype).itemsize)
    grid = (pl.cdiv(NC, TM),)

    out = pl.pallas_call(
        _pool_kernel,
        out_shape=jax.ShapeDtypeStruct((NC, 1), x.dtype),
        grid=grid,
        in_specs=[pl.BlockSpec((TM, HW), lambda i: (i, 0))],
        out_specs=pl.BlockSpec((TM, 1), lambda i: (i, 0)),
        compiler_params=pltpu.CompilerParams(
            dimension_semantics=("parallel",),      # megacore-shardable axis
            vmem_limit_bytes=40 * 1024 * 1024,      # headroom over 2x12 MiB tiles
        ),
    )(x2d)

    return out.reshape(N, C, 1, 1)


if __name__ == "__main__":
    key = jax.random.PRNGKey(0)
    N, C, H, W = 2, 4, 16, 16
    x = jax.random.normal(key, (N, C, H, W), dtype=jnp.float32)

    y = pooling_forward(x)
    jax.block_until_ready(y)

    # Reference check against plain JAX semantics of the PyTorch module.
    ref = (jnp.mean(x, axis=(2, 3), keepdims=True)
           + jnp.max(x, axis=(2, 3), keepdims=True)) * 0.5
    assert y.shape == (N, C, 1, 1)
    assert jnp.allclose(y, ref, atol=1e-5, rtol=1e-5)

    print("KERNEL_OK")
</pallas_src>

<mosaic_0001>
module attributes {stable_mosaic.version = 11 : i64} {
  func.func @_pool_kernel(%arg0: i32, %arg1: memref<8x256xf32, #tpu.memory_space<vmem>>, %arg2: memref<8x1xf32, #tpu.memory_space<vmem>>) attributes {dimension_semantics = [#tpu.dimension_semantics<parallel>], iteration_bounds = array<i64: 1>, scalar_prefetch = 0 : i64, scratch_operands = 0 : i64, tpu.core_type = #tpu.core_type<tc>, window_params = [{transform_indices = @transform_0, window_bounds = array<i64: 8, 256>}, {transform_indices = @transform_1, window_bounds = array<i64: 8, 1>}]} {
    %c0 = arith.constant 0 : index
    %c0_0 = arith.constant 0 : index
    %0 = vector.load %arg1[%c0, %c0_0] : memref<8x256xf32, #tpu.memory_space<vmem>>, vector<8x256xf32>
    %cst = arith.constant dense<0.000000e+00> : vector<8xf32>
    %1 = vector.multi_reduction <add>, %0, %cst [1] : vector<8x256xf32> to vector<8xf32>
    %2 = vector.shape_cast %1 : vector<8xf32> to vector<8x1xf32>
    %cst_1 = arith.constant dense<0xFF800000> : vector<8xf32>
    %3 = vector.multi_reduction <maximumf>, %0, %cst_1 [1] : vector<8x256xf32> to vector<8xf32>
    %4 = vector.shape_cast %3 : vector<8xf32> to vector<8x1xf32>
    %cst_2 = arith.constant 0.001953125 : f32
    %5 = vector.broadcast %cst_2 : f32 to vector<8x1xf32>
    %6 = arith.mulf %2, %5 : vector<8x1xf32>
    %cst_3 = arith.constant 5.000000e-01 : f32
    %7 = vector.broadcast %cst_3 : f32 to vector<8x1xf32>
    %8 = arith.mulf %4, %7 : vector<8x1xf32>
    %9 = arith.addf %6, %8 : vector<8x1xf32>
    %c0_4 = arith.constant 0 : index
    %c0_5 = arith.constant 0 : index
    %10 = vector.load %arg2[%c0_4, %c0_5] : memref<8x1xf32, #tpu.memory_space<vmem>>, vector<8x1xf32>
    tpu.vector_store %arg2[%c0_4, %c0_5], %9 {strides = array<i32>} : memref<8x1xf32, #tpu.memory_space<vmem>>, vector<8x1xf32>,
    return
  }
  func.func @transform_0(%arg0: i32) -> (i32, i32) {
    %c0_i32 = arith.constant 0 : i32
    %c0_i32_0 = arith.constant 0 : i32
    return %arg0, %c0_i32 : i32, i32
  }
  func.func @transform_1(%arg0: i32) -> (i32, i32) {
    %c0_i32 = arith.constant 0 : i32
    %c0_i32_0 = arith.constant 0 : i32
    return %arg0, %c0_i32 : i32, i32
  }
}

</mosaic_0001>

<llo_original>
// kernel: tpu_custom_call.1
$region0: #{tpu_custom_call.1}
  #allocation0 [shape = 'u32[]', space=smem, size = 0x4, offset = 0x4, fixed_abs, tag = 'smem constant byte address 0x4 - core index']
  #allocation1 [shape = 'u32[144,128]{1,0:T(1,128)}', space=vmem, size = 0x12000, scoped, tag = 'internal scratch']
  %s0 = inlined_call_operand.hbm [shape: f32[8,256], index: 0, kind: input, shape index: {}]
  %s1 = inlined_call_operand.vmem [shape: f32[8,1], index: 1, kind: output, shape index: {}]
  %s2 = sld [smem:[#allocation0]]
  $region18: #{tpu_custom_call.1} parent=0
    _
  %s4 = ssub.s32 1, %s2
  %s5 = scalar_select 0, %s4, %s2
  $region1: #{tpu_custom_call.1} parent=0
    #allocation2 [shape = 'u8[8192]{0}', space=vmem, size = 0x2000, scoped, tag = 'input window, operand 0, single buffered']
    #allocation3 [shape = 's32[1]{0}', space=sflag, size = 0x4, scoped, tag = 'scoped memory for tpu_custom_call.1']
    %6 = vsyncpa [#allocation3], 0
    // Predicated region
    $region2: #{tpu_custom_call.1} parent=1 // pred_check
      _
    $region3: #{tpu_custom_call.1} parent=1 // pred_check_branch
      %8 = sbr.rel (0) target = $region5
    $region4: #{tpu_custom_call.1} parent=1 // pred_region
      %s10 = ssub.s32 256, 256
      %11 = vsyncadd [#allocation3], %s10
      %s13 = sshll.u32 [#allocation2], 4
      %s14 = int_to_ptr.vmem [resolvable:$true] %s13
      %16 = dma.hbm_to_vmem [thread:$0]  %s0, 256, %s14, [#allocation3]
    $region5: #{tpu_custom_call.1} parent=1 // pred_fallthru
      _
    // Predicated region
    $region6: #{tpu_custom_call.1} parent=1 // pred_check
      _
    $region7: #{tpu_custom_call.1} parent=1 // pred_check_branch
      %18 = sbr.rel (0) target = $region9
    $region8: #{tpu_custom_call.1} parent=1 // pred_region
      %19 = dma.done [#allocation3], 256
    $region9: #{tpu_custom_call.1} parent=1 // pred_fallthru
      _
    %v20 = vld [vmem:[#allocation2] sm:$0xff]
    %v21 = vld [vmem:[#allocation2 + $0x8] sm:$0xff]
    %v22 = vadd.f32 %v20, %v21
    %23 = vadd.xlane.f32.xlu0 %v22
    %v24 = vpop.xlane.xlu0 %23
    %v25 = vmax.f32 %v20, %v21
    %26 = vmax.xlane.f32.xlu0 %v25
    %v27 = vpop.xlane.xlu0 %26
    %v28 = vmul.f32 %v24, 0.001953125
    %v29 = vmul.f32 %v27, 0.5
    %v30 = vadd.f32 %v28, %v29
    %vm31 = vcmask 7168
    %32 = vst.msk [vmem:[%s1] sm:$0xff] %vm31, %v30
    // Predicated region
    $region10: #{tpu_custom_call.1} parent=1 // pred_check
      _
    $region11: #{tpu_custom_call.1} parent=1 // pred_check_branch
      %34 = sbr.rel (0) target = $region13
    $region12: #{tpu_custom_call.1} parent=1 // pred_region
      _
    $region13: #{tpu_custom_call.1} parent=1 // pred_fallthru
      _
    // Predicated region
    $region14: #{tpu_custom_call.1} parent=1 // pred_check
      _
    $region15: #{tpu_custom_call.1} parent=1 // pred_check_branch
      %36 = sbr.rel (0) target = $region17
    $region16: #{tpu_custom_call.1} parent=1 // pred_region
      _
    $region17: #{tpu_custom_call.1} parent=1 // pred_fallthru
      _
    %37 = vsyncpa [#allocation3], 1

</llo_original>
